<compile_context>
chip_gen: v5e
topology: v5e:2x2
jax: 0.10.0
libtpu: 0.0.40
codegen_flags: <defaults>
</compile_context>

<pallas_src>
import functools

import jax
import jax.numpy as jnp
from jax.experimental import pallas as pl
from jax.experimental.pallas import tpu as pltpu


LANE = 128
SUBLANE_BF16 = 16  # bf16 second-to-last dim granularity


def _round_up(n, m):
    return ((n + m - 1) // m) * m


def _vmem_capacity_bytes():
    """Generation-aware VMEM capacity (128 MiB on v5e/v6e, 64 MiB per TC on v7x)."""
    try:
        cap = int(pltpu.get_tpu_info().vmem_capacity_bytes)
        if cap > 0:
            return cap
    except Exception:
        pass
    return 64 << 20  # conservative fallback: v7x per-TensorCore VMEM


def _resident_bytes(dims_p):
    pb = 0
    for i in range(len(dims_p) - 1):
        pb += dims_p[i] * dims_p[i + 1] * 2 + dims_p[i + 1] * 4  # bf16 W + f32 b
    return 2 * pb  # Pallas double-buffers inputs even with a constant index_map


def _tile_bytes(dims_p, tb):
    stream = 2 * tb * dims_p[0] * 2 + 2 * tb * dims_p[-1] * 2  # 2-deep x(bf16) + out(bf16)
    acts = 3 * tb * max(dims_p) * 4                            # live f32 activation headroom
    return stream + acts


def _choose_tb(dims_p, budget_bytes):
    """Largest batch tile (1024 down to 16) whose resident weights + streamed tiles fit."""
    resident = _resident_bytes(dims_p)
    if resident + _tile_bytes(dims_p, 16) > budget_bytes:
        # TODO(synk): stream weights per layer (pltpu.emit_pipeline or an extra grid axis)
        # instead of requiring all layers simultaneously VMEM-resident.
        raise ValueError(
            f"MLP weights (~{resident >> 20} MiB with pipeline double-buffering) exceed the "
            f"VMEM budget ({budget_bytes >> 20} MiB); weight streaming is not implemented."
        )
    tb = 1024
    while tb > 16 and resident + _tile_bytes(dims_p, tb) > budget_bytes:
        tb //= 2
    return max(tb, 16)


def _mlp_kernel(x_ref, *refs, num_layers, final_act, classes, classes_pad):
    # refs = (w0_ref, b0_ref, w1_ref, b1_ref, ..., o_ref)
    o_ref = refs[-1]
    param_refs = refs[:-1]

    h = x_ref[...]  # bf16 (TB, in_pad)
    for li in range(num_layers):
        w = param_refs[2 * li][...]        # bf16 (in_pad, out_pad), VMEM-resident
        b = param_refs[2 * li + 1][...]    # f32  (1, out_pad)
        acc = jnp.dot(h, w, preferred_element_type=jnp.float32) + b
        is_last = li == num_layers - 1
        if (not is_last) or (final_act == "relu"):
            h = jnp.maximum(acc, 0.0)
            if not is_last:
                h = h.astype(jnp.bfloat16)  # carry bf16 between layers (lower vreg pressure)
        elif final_act == "softmax":
            if classes_pad != classes:
                # mask padded lanes so they don't leak into the softmax sum
                lane = jax.lax.broadcasted_iota(jnp.int32, acc.shape, 1)
                acc = jnp.where(lane < classes, acc, -jnp.inf)
            m = jnp.max(acc, axis=-1, keepdims=True)
            e = jnp.exp(acc - m)
            h = e * pl.reciprocal(jnp.sum(e, axis=-1, keepdims=True), approx=True)
        else:
            h = acc
    o_ref[...] = h.astype(o_ref.dtype)


class PallasNet:
    """Fused MLP forward. Parameters are padded/cast to bf16 once at construction;
    each call only pads the batch, runs one pallas_call, and slices the result."""

    def __init__(self, params, inputs, final_act="none"):
        assert final_act in ("none", "relu", "softmax")
        self.final_act = final_act
        self.num_layers = len(params)
        self.in_dim = inputs
        self.classes = params[-1][0].shape[1]

        dims = [inputs] + [w.shape[1] for w, _ in params]
        self.dims_p = [_round_up(d, LANE) for d in dims]

        # --- pad / cast parameters ONCE (hoisted out of the per-call path) ---
        flat = []
        for li, (w, b) in enumerate(params):
            w = jnp.asarray(w, jnp.float32)
            b = jnp.asarray(b, jnp.float32).reshape(1, -1)
            wp = jnp.zeros((self.dims_p[li], self.dims_p[li + 1]), jnp.bfloat16)
            wp = wp.at[: w.shape[0], : w.shape[1]].set(w.astype(jnp.bfloat16))
            bp = jnp.zeros((1, self.dims_p[li + 1]), jnp.float32)
            bp = bp.at[:, : b.shape[1]].set(b)
            flat.extend([wp, bp])
        self.flat = [jax.device_put(a) for a in flat]

        self.vmem_cap = _vmem_capacity_bytes()
        # ~100 MiB scoped budget on 128 MiB parts, ~44 MiB on v7x's 64 MiB parts
        self.budget = max(min(self.vmem_cap - (20 << 20), 100 << 20), 24 << 20)
        self.auto_tb = _choose_tb(self.dims_p, self.budget)
        self._fwd_cache = {}

        # TODO(synk): for feature-tiny inputs (e.g. 16 padded to 128 lanes) pack 8 logical
        # rows per 128-lane row in the x stream to recover the 8x padding bandwidth waste.

    def _build_forward(self, B, tb, b_pad, grid, vmem_limit):
        dims_p = self.dims_p
        in_dim, classes = self.in_dim, self.classes

        kernel = functools.partial(
            _mlp_kernel,
            num_layers=self.num_layers,
            final_act=self.final_act,
            classes=classes,
            classes_pad=dims_p[-1],
        )

        in_specs = [pl.BlockSpec((tb, dims_p[0]), lambda i: (i, 0))] + [
            pl.BlockSpec(a.shape, lambda i: (0, 0)) for a in self.flat  # VMEM-resident
        ]
        out_spec = pl.BlockSpec((tb, dims_p[-1]), lambda i: (i, 0))

        call = pl.pallas_call(
            kernel,
            out_shape=jax.ShapeDtypeStruct((b_pad, dims_p[-1]), jnp.bfloat16),
            grid=grid,
            in_specs=in_specs,
            out_specs=out_spec,
            compiler_params=pltpu.CompilerParams(
                dimension_semantics=("parallel",),
                vmem_limit_bytes=vmem_limit,
            ),
        )

        def fwd(x, *flat):
            x_p = jnp.zeros((b_pad, dims_p[0]), jnp.bfloat16)
            x_p = x_p.at[:B, :in_dim].set(x.astype(jnp.bfloat16))
            out_p = call(x_p, *flat)
            return out_p[:B, :classes].astype(jnp.float32)

        return jax.jit(fwd)

    def __call__(self, x, tb=None):
        B, in_dim = x.shape
        assert in_dim == self.in_dim, "input feature dim mismatch"

        if tb is None:
            tb = self.auto_tb
        # never tile beyond the batch
        tb = _round_up(min(tb, max(B, SUBLANE_BF16)), SUBLANE_BF16)
        # keep >= 2 grid steps when the batch allows so v7x's 2 TensorCores both work
        if B >= 2 * SUBLANE_BF16:
            tb = min(tb, _round_up((B + 1) // 2, SUBLANE_BF16))
        tb = max(tb, SUBLANE_BF16)

        b_pad = _round_up(B, tb)
        grid = (b_pad // tb,)

        needed = _resident_bytes(self.dims_p) + _tile_bytes(self.dims_p, tb)
        vmem_limit = int(min(max(needed + (8 << 20), 32 << 20), self.vmem_cap - (4 << 20)))

        key = (B, tb)
        if key not in self._fwd_cache:
            self._fwd_cache[key] = self._build_forward(B, tb, b_pad, grid, vmem_limit)
        return self._fwd_cache[key](x, *self.flat)


# ----------------------------------------------------------------------------
# Parameter construction (mirrors torch orthogonal_ init + constant bias)
# ----------------------------------------------------------------------------
def orthogonal_init(key, in_dim, out_dim, gain):
    n = max(in_dim, out_dim)
    a = jax.random.normal(key, (n, n), jnp.float32)
    q, r = jnp.linalg.qr(a)
    q = q * jnp.sign(jnp.diag(r))[None, :]
    return (gain * q[:in_dim, :out_dim]).astype(jnp.float32)


def make_net_params(key, inputs, hidden_units, classes, std=jnp.sqrt(2.0), bias_const=0.0):
    dims = [inputs] + list(hidden_units) + [classes]
    params = []
    for i in range(len(dims) - 1):
        key, sub = jax.random.split(key)
        w = orthogonal_init(sub, dims[i], dims[i + 1], std)
        b = jnp.full((1, dims[i + 1]), bias_const, dtype=jnp.float32)
        params.append((w, b))
    return params


# ----------------------------------------------------------------------------
# Pure-JAX reference with matching bf16-input / f32-accumulate numerics
# ----------------------------------------------------------------------------
def net_forward_ref(x, params, *, final_act="none"):
    h = x.astype(jnp.float32)
    n = len(params)
    for li, (w, b) in enumerate(params):
        acc = jnp.dot(h.astype(jnp.bfloat16), w.astype(jnp.bfloat16),
                      preferred_element_type=jnp.float32) + b.astype(jnp.float32)
        is_last = li == n - 1
        if (not is_last) or (final_act == "relu"):
            h = jnp.maximum(acc, 0.0)
        elif is_last and final_act == "softmax":
            h = jax.nn.softmax(acc, axis=-1)
        else:
            h = acc
    return h


if __name__ == "__main__":
    # Net(inputs=16, classes=8, hidden_units=[32, 32], softmax=False, open_ended=False)
    inputs, classes, hidden_units = 16, 8, [32, 32]
    batch = 48  # > one tile so the (parallel) batch grid is exercised (grid >= 2)

    key = jax.random.PRNGKey(0)
    key_x, key_p = jax.random.split(key)

    x = jax.random.normal(key_x, (batch, inputs), jnp.float32)
    params = make_net_params(key_p, inputs, hidden_units, classes)

    # plain forward (softmax=False, open_ended=False)
    net = PallasNet(params, inputs, final_act="none")
    out = jax.block_until_ready(net(x))
    ref = net_forward_ref(x, params, final_act="none")
    assert out.shape == (batch, classes)
    assert jnp.allclose(out, ref, atol=2e-2, rtol=2e-2), "mismatch vs pure-JAX reference"

    # softmax head (softmax=True) — padded lanes masked, approx reciprocal on EUP
    net_sm = PallasNet(params, inputs, final_act="softmax")
    out_sm = jax.block_until_ready(net_sm(x))
    ref_sm = net_forward_ref(x, params, final_act="softmax")
    assert jnp.allclose(out_sm, ref_sm, atol=2e-2, rtol=2e-2), "softmax mismatch"
    assert jnp.allclose(jnp.sum(out_sm, axis=-1), 1.0, atol=2e-2), "softmax rows must sum to 1"

    # open-ended head (open_ended=True -> trailing ReLU)
    net_oe = PallasNet(params, inputs, final_act="relu")
    out_oe = jax.block_until_ready(net_oe(x))
    ref_oe = net_forward_ref(x, params, final_act="relu")
    assert jnp.allclose(out_oe, ref_oe, atol=2e-2, rtol=2e-2), "open-ended mismatch"
    assert bool(jnp.all(out_oe >= 0)), "ReLU head must be non-negative"

    print("KERNEL_OK")
</pallas_src>

<mosaic_0001>
module attributes {stable_mosaic.version = 11 : i64} {
  func.func @_mlp_kernel(%arg0: i32, %arg1: memref<32x128xbf16, #tpu.memory_space<vmem>>, %arg2: memref<128x128xbf16, #tpu.memory_space<vmem>>, %arg3: memref<1x128xf32, #tpu.memory_space<vmem>>, %arg4: memref<128x128xbf16, #tpu.memory_space<vmem>>, %arg5: memref<1x128xf32, #tpu.memory_space<vmem>>, %arg6: memref<128x128xbf16, #tpu.memory_space<vmem>>, %arg7: memref<1x128xf32, #tpu.memory_space<vmem>>, %arg8: memref<32x128xbf16, #tpu.memory_space<vmem>>) attributes {dimension_semantics = [#tpu.dimension_semantics<parallel>], iteration_bounds = array<i64: 2>, scalar_prefetch = 0 : i64, scratch_operands = 0 : i64, tpu.core_type = #tpu.core_type<tc>, window_params = [{transform_indices = @transform_0, window_bounds = array<i64: 32, 128>}, {pipeline_mode = #tpu.pipeline_mode<synchronous>, transform_indices = @transform_1, window_bounds = array<i64: 128, 128>}, {pipeline_mode = #tpu.pipeline_mode<synchronous>, transform_indices = @transform_2, window_bounds = array<i64: 1, 128>}, {pipeline_mode = #tpu.pipeline_mode<synchronous>, transform_indices = @transform_3, window_bounds = array<i64: 128, 128>}, {pipeline_mode = #tpu.pipeline_mode<synchronous>, transform_indices = @transform_4, window_bounds = array<i64: 1, 128>}, {pipeline_mode = #tpu.pipeline_mode<synchronous>, transform_indices = @transform_5, window_bounds = array<i64: 128, 128>}, {pipeline_mode = #tpu.pipeline_mode<synchronous>, transform_indices = @transform_6, window_bounds = array<i64: 1, 128>}, {transform_indices = @transform_7, window_bounds = array<i64: 32, 128>}]} {
    %c0 = arith.constant 0 : index
    %c0_0 = arith.constant 0 : index
    %0 = vector.load %arg1[%c0, %c0_0] : memref<32x128xbf16, #tpu.memory_space<vmem>>, vector<32x128xbf16>
    %c0_1 = arith.constant 0 : index
    %c0_2 = arith.constant 0 : index
    %1 = vector.load %arg2[%c0_1, %c0_2] : memref<128x128xbf16, #tpu.memory_space<vmem>>, vector<128x128xbf16>
    %c0_3 = arith.constant 0 : index
    %c0_4 = arith.constant 0 : index
    %2 = vector.load %arg3[%c0_3, %c0_4] : memref<1x128xf32, #tpu.memory_space<vmem>>, vector<1x128xf32>
    %cst = arith.constant dense<0.000000e+00> : vector<32x128xf32>
    %3 = tpu.matmul %0, %1, %cst {dimension_numbers = #tpu.dot_dimension_numbers<[1], [0], [0], [1], [0, 0, 1, 1], [], []>} : vector<32x128xbf16>, vector<128x128xbf16>, vector<32x128xf32> -> vector<32x128xf32>
    %4 = vector.broadcast %2 : vector<1x128xf32> to vector<32x128xf32>
    %5 = arith.addf %3, %4 : vector<32x128xf32>
    %cst_5 = arith.constant 0.000000e+00 : f32
    %6 = vector.broadcast %cst_5 : f32 to vector<32x128xf32>
    %7 = arith.maximumf %5, %6 : vector<32x128xf32>
    %8 = arith.truncf %7 : vector<32x128xf32> to vector<32x128xbf16>
    %c0_6 = arith.constant 0 : index
    %c0_7 = arith.constant 0 : index
    %9 = vector.load %arg4[%c0_6, %c0_7] : memref<128x128xbf16, #tpu.memory_space<vmem>>, vector<128x128xbf16>
    %c0_8 = arith.constant 0 : index
    %c0_9 = arith.constant 0 : index
    %10 = vector.load %arg5[%c0_8, %c0_9] : memref<1x128xf32, #tpu.memory_space<vmem>>, vector<1x128xf32>
    %cst_10 = arith.constant dense<0.000000e+00> : vector<32x128xf32>
    %11 = tpu.matmul %8, %9, %cst_10 {dimension_numbers = #tpu.dot_dimension_numbers<[1], [0], [0], [1], [0, 0, 1, 1], [], []>} : vector<32x128xbf16>, vector<128x128xbf16>, vector<32x128xf32> -> vector<32x128xf32>
    %12 = vector.broadcast %10 : vector<1x128xf32> to vector<32x128xf32>
    %13 = arith.addf %11, %12 : vector<32x128xf32>
    %cst_11 = arith.constant 0.000000e+00 : f32
    %14 = vector.broadcast %cst_11 : f32 to vector<32x128xf32>
    %15 = arith.maximumf %13, %14 : vector<32x128xf32>
    %16 = arith.truncf %15 : vector<32x128xf32> to vector<32x128xbf16>
    %c0_12 = arith.constant 0 : index
    %c0_13 = arith.constant 0 : index
    %17 = vector.load %arg6[%c0_12, %c0_13] : memref<128x128xbf16, #tpu.memory_space<vmem>>, vector<128x128xbf16>
    %c0_14 = arith.constant 0 : index
    %c0_15 = arith.constant 0 : index
    %18 = vector.load %arg7[%c0_14, %c0_15] : memref<1x128xf32, #tpu.memory_space<vmem>>, vector<1x128xf32>
    %cst_16 = arith.constant dense<0.000000e+00> : vector<32x128xf32>
    %19 = tpu.matmul %16, %17, %cst_16 {dimension_numbers = #tpu.dot_dimension_numbers<[1], [0], [0], [1], [0, 0, 1, 1], [], []>} : vector<32x128xbf16>, vector<128x128xbf16>, vector<32x128xf32> -> vector<32x128xf32>
    %20 = vector.broadcast %18 : vector<1x128xf32> to vector<32x128xf32>
    %21 = arith.addf %19, %20 : vector<32x128xf32>
    %22 = arith.truncf %21 : vector<32x128xf32> to vector<32x128xbf16>
    %c0_17 = arith.constant 0 : index
    %c0_18 = arith.constant 0 : index
    %23 = vector.load %arg8[%c0_17, %c0_18] : memref<32x128xbf16, #tpu.memory_space<vmem>>, vector<32x128xbf16>
    tpu.vector_store %arg8[%c0_17, %c0_18], %22 {strides = array<i32>} : memref<32x128xbf16, #tpu.memory_space<vmem>>, vector<32x128xbf16>,
    return
  }
  func.func @transform_0(%arg0: i32) -> (i32, i32) {
    %c0_i32 = arith.constant 0 : i32
    %c0_i32_0 = arith.constant 0 : i32
    return %arg0, %c0_i32 : i32, i32
  }
  func.func @transform_1(%arg0: i32) -> (i32, i32) {
    %c0_i32 = arith.constant 0 : i32
    %c0_i32_0 = arith.constant 0 : i32
    %c0_i32_1 = arith.constant 0 : i32
    return %c0_i32, %c0_i32_0 : i32, i32
  }
  func.func @transform_2(%arg0: i32) -> (i32, i32) {
    %c0_i32 = arith.constant 0 : i32
    %c0_i32_0 = arith.constant 0 : i32
    %c0_i32_1 = arith.constant 0 : i32
    return %c0_i32, %c0_i32_0 : i32, i32
  }
  func.func @transform_3(%arg0: i32) -> (i32, i32) {
    %c0_i32 = arith.constant 0 : i32
    %c0_i32_0 = arith.constant 0 : i32
    %c0_i32_1 = arith.constant 0 : i32
    return %c0_i32, %c0_i32_0 : i32, i32
  }
  func.func @transform_4(%arg0: i32) -> (i32, i32) {
    %c0_i32 = arith.constant 0 : i32
    %c0_i32_0 = arith.constant 0 : i32
    %c0_i32_1 = arith.constant 0 : i32
    return %c0_i32, %c0_i32_0 : i32, i32
  }
  func.func @transform_5(%arg0: i32) -> (i32, i32) {
    %c0_i32 = arith.constant 0 : i32
    %c0_i32_0 = arith.constant 0 : i32
    %c0_i32_1 = arith.constant 0 : i32
    return %c0_i32, %c0_i32_0 : i32, i32
  }
  func.func @transform_6(%arg0: i32) -> (i32, i32) {
    %c0_i32 = arith.constant 0 : i32
    %c0_i32_0 = arith.constant 0 : i32
    %c0_i32_1 = arith.constant 0 : i32
    return %c0_i32, %c0_i32_0 : i32, i32
  }
  func.func @transform_7(%arg0: i32) -> (i32, i32) {
    %c0_i32 = arith.constant 0 : i32
    %c0_i32_0 = arith.constant 0 : i32
    return %arg0, %c0_i32 : i32, i32
  }
}

</mosaic_0001>

<llo_original>
// kernel: fwd.1
$region0: #{fwd.1}
  #allocation0 [shape = 'u32[]', space=smem, size = 0x4, offset = 0x4, fixed_abs, tag = 'smem constant byte address 0x4 - core index']
  #allocation1 [shape = 'u32[72,128]{1,0:T(1,128)}', space=vmem, size = 0x9000, scoped, tag = 'internal scratch']
  %s0 = inlined_call_operand.vmem [shape: bf16[64,128], index: 0, kind: input, shape index: {}]
  %s1 = inlined_call_operand.vmem [shape: bf16[128,128], index: 1, kind: input, shape index: {}]
  %s2 = inlined_call_operand.vmem [shape: f32[1,128], index: 2, kind: input, shape index: {}]
  %s3 = inlined_call_operand.hbm [shape: bf16[128,128], index: 3, kind: input, shape index: {}]
  %s4 = inlined_call_operand.vmem [shape: f32[1,128], index: 4, kind: input, shape index: {}]
  %s5 = inlined_call_operand.hbm [shape: bf16[128,128], index: 5, kind: input, shape index: {}]
  %s6 = inlined_call_operand.vmem [shape: f32[1,128], index: 6, kind: input, shape index: {}]
  %s7 = inlined_call_operand.vmem [shape: bf16[64,128], index: 7, kind: output, shape index: {}]
  %s8 = sld [smem:[#allocation0]]
  $region69: #{fwd.1} parent=0
    _
  %s10 = ssub.s32 1, %s8
  %s11 = scalar_select 0, %s10, %s8
  $region1: #{fwd.1} parent=0
    #allocation2 [shape = 'u8[32768]{0}', space=vmem, size = 0x8000, scoped, tag = 'input window, operand 3, single buffered']
    #allocation3 [shape = 's32[2]{0}', space=sflag, size = 0x8, scoped, tag = 'scoped memory for fwd.1']
    #allocation4 [shape = 'u8[32768]{0}', space=vmem, size = 0x8000, scoped, tag = 'input window, operand 5, single buffered']
    #allocation5 [shape = 's32[1]{0}', space=sflag, size = 0x4, scoped, tag = 'scoped memory for fwd.1']
    %12 = vsyncpa [#allocation3], 0
    %13 = vsyncpa [#allocation5], 0
    loop: start=0, step=1, limit=4
    $region2: #{fwd.1} parent=1 // loop_pre_header
      _
    $region3: #{fwd.1} parent=1 // loop_header
      %s15 = sphi 0, %s19
      %p16 = scmp.ge.s32.totalorder %s15, 4
      %s25 = sphi 0, %s27
      %s28 = sphi 0, %s25
      %s29 = sphi 0, %s28
      %s45 = sphi 0, %s29
      %s49 = sphi 0, %s49
      %s51 = sphi 0, %s49
      %s52 = sphi 0, %s51
      %s66 = sphi 0, %s52
      %s70 = sphi 0, %s70
      %s72 = sphi 0, %s70
      %s73 = sphi 0, %s72
      %s87 = sphi 0, %s73
      %s91 = sphi 0, %s91
      %s93 = sphi 0, %s91
      %s94 = sphi 0, %s93
      %s108 = sphi 0, %s94
      %s112 = sphi 0, %s112
      %s114 = sphi 0, %s112
      %s115 = sphi 0, %s114
      %s129 = sphi 0, %s115
      %s133 = sphi 0, %s133
      %s135 = sphi 0, %s133
      %s136 = sphi 0, %s135
      %s150 = sphi 0, %s136
      %s154 = sphi 0, %s154
      %s156 = sphi 0, %s154
      %s157 = sphi 0, %s156
      %s171 = sphi 0, %s157
      %s177 = sphi 0, %s179
      %s180 = sphi 0, %s177
      %s181 = sphi 0, %s180
      %s197 = sphi 0, %s181
    $region4: #{fwd.1} parent=1 // loop_header_branch
      %18 = sbr.rel (%p16) target = $region8
    $region5: #{fwd.1} parent=1 // loop_body
      %s20 = ssub.s32 %s15, 1
      %s21 = ssub.s32 %s15, 2
      %s22 = sadd.s32 %s15, 1
      %s23 = ssub.s32 %s15, %s22
      %p24 = scmp.eq.s32.totalorder %s23, 0
      %s26 = sadd.s32 %s25, 1
      %s27 = scalar_select %p24, %s25, %s26
      %p30 = pneg %p24
      %p31 = scmp.eq.s32.totalorder %s15, 1
      %p32 = por %p30, %p31
      %p33 = scmp.ne.s32.totalorder %s25, %s28
      %p34 = scmp.eq.s32.totalorder %s15, 0
      %p35 = por %p33, %p34
      %p36 = scmp.ne.s32.totalorder %s25, %s28
      %p37 = scmp.eq.s32.totalorder %s20, 1
      %p38 = por %p36, %p37
      %p39 = scmp.ne.s32.totalorder %s28, %s29
      %p40 = scmp.eq.s32.totalorder %s20, 0
      %p41 = por %p39, %p40
      %p42 = scmp.ne.s32.totalorder %s28, %s29
      %p43 = scmp.eq.s32.totalorder %s21, 1
      %p44 = por %p42, %p43
      %p46 = scmp.ne.s32.totalorder %s29, %s45
      %p47 = scmp.eq.s32.totalorder %s21, 0
      %p48 = por %p46, %p47
      %s50 = sadd.s32 %s49, 1
      %p53 = scmp.eq.s32.totalorder %s15, 1
      %p54 = scmp.ne.s32.totalorder %s49, %s51
      %p55 = scmp.eq.s32.totalorder %s15, 0
      %p56 = por %p54, %p55
      %p57 = scmp.ne.s32.totalorder %s49, %s51
      %p58 = scmp.eq.s32.totalorder %s20, 1
      %p59 = por %p57, %p58
      %p60 = scmp.ne.s32.totalorder %s51, %s52
      %p61 = scmp.eq.s32.totalorder %s20, 0
      %p62 = por %p60, %p61
      %p63 = scmp.ne.s32.totalorder %s51, %s52
      %p64 = scmp.eq.s32.totalorder %s21, 1
      %p65 = por %p63, %p64
      %p67 = scmp.ne.s32.totalorder %s52, %s66
      %p68 = scmp.eq.s32.totalorder %s21, 0
      %p69 = por %p67, %p68
      %s71 = sadd.s32 %s70, 1
      %p74 = scmp.eq.s32.totalorder %s15, 1
      %p75 = scmp.ne.s32.totalorder %s70, %s72
      %p76 = scmp.eq.s32.totalorder %s15, 0
      %p77 = por %p75, %p76
      %p78 = scmp.ne.s32.totalorder %s70, %s72
      %p79 = scmp.eq.s32.totalorder %s20, 1
      %p80 = por %p78, %p79
      %p81 = scmp.ne.s32.totalorder %s72, %s73
      %p82 = scmp.eq.s32.totalorder %s20, 0
      %p83 = por %p81, %p82
      %p84 = scmp.ne.s32.totalorder %s72, %s73
      %p85 = scmp.eq.s32.totalorder %s21, 1
      %p86 = por %p84, %p85
      %p88 = scmp.ne.s32.totalorder %s73, %s87
      %p89 = scmp.eq.s32.totalorder %s21, 0
      %p90 = por %p88, %p89
      %s92 = sadd.s32 %s91, 1
      %p95 = scmp.eq.s32.totalorder %s15, 1
      %p96 = scmp.ne.s32.totalorder %s91, %s93
      %p97 = scmp.eq.s32.totalorder %s15, 0
      %p98 = por %p96, %p97
      %p99 = scmp.ne.s32.totalorder %s91, %s93
      %p100 = scmp.eq.s32.totalorder %s20, 1
      %p101 = por %p99, %p100
      %p102 = scmp.ne.s32.totalorder %s93, %s94
      %p103 = scmp.eq.s32.totalorder %s20, 0
      %p104 = por %p102, %p103
      %p105 = scmp.ne.s32.totalorder %s93, %s94
      %p106 = scmp.eq.s32.totalorder %s21, 1
      %p107 = por %p105, %p106
      %p109 = scmp.ne.s32.totalorder %s94, %s108
      %p110 = scmp.eq.s32.totalorder %s21, 0
      %p111 = por %p109, %p110
      %s113 = sadd.s32 %s112, 1
      %p116 = scmp.eq.s32.totalorder %s15, 1
      %p117 = scmp.ne.s32.totalorder %s112, %s114
      %p118 = scmp.eq.s32.totalorder %s15, 0
      %p119 = por %p117, %p118
      %p120 = scmp.ne.s32.totalorder %s112, %s114
      %p121 = scmp.eq.s32.totalorder %s20, 1
      %p122 = por %p120, %p121
      %p123 = scmp.ne.s32.totalorder %s114, %s115
      %p124 = scmp.eq.s32.totalorder %s20, 0
      %p125 = por %p123, %p124
      %p126 = scmp.ne.s32.totalorder %s114, %s115
      %p127 = scmp.eq.s32.totalorder %s21, 1
      %p128 = por %p126, %p127
      %p130 = scmp.ne.s32.totalorder %s115, %s129
      %p131 = scmp.eq.s32.totalorder %s21, 0
      %p132 = por %p130, %p131
      %s134 = sadd.s32 %s133, 1
      %p137 = scmp.eq.s32.totalorder %s15, 1
      %p138 = scmp.ne.s32.totalorder %s133, %s135
      %p139 = scmp.eq.s32.totalorder %s15, 0
      %p140 = por %p138, %p139
      %p141 = scmp.ne.s32.totalorder %s133, %s135
      %p142 = scmp.eq.s32.totalorder %s20, 1
      %p143 = por %p141, %p142
      %p144 = scmp.ne.s32.totalorder %s135, %s136
      %p145 = scmp.eq.s32.totalorder %s20, 0
      %p146 = por %p144, %p145
      %p147 = scmp.ne.s32.totalorder %s135, %s136
      %p148 = scmp.eq.s32.totalorder %s21, 1
      %p149 = por %p147, %p148
      %p151 = scmp.ne.s32.totalorder %s136, %s150
      %p152 = scmp.eq.s32.totalorder %s21, 0
      %p153 = por %p151, %p152
      %s155 = sadd.s32 %s154, 1
      %p158 = scmp.eq.s32.totalorder %s15, 1
      %p159 = scmp.ne.s32.totalorder %s154, %s156
      %p160 = scmp.eq.s32.totalorder %s15, 0
      %p161 = por %p159, %p160
      %p162 = scmp.ne.s32.totalorder %s154, %s156
      %p163 = scmp.eq.s32.totalorder %s20, 1
      %p164 = por %p162, %p163
      %p165 = scmp.ne.s32.totalorder %s156, %s157
      %p166 = scmp.eq.s32.totalorder %s20, 0
      %p167 = por %p165, %p166
      %p168 = scmp.ne.s32.totalorder %s156, %s157
      %p169 = scmp.eq.s32.totalorder %s21, 1
      %p170 = por %p168, %p169
      %p172 = scmp.ne.s32.totalorder %s157, %s171
      %p173 = scmp.eq.s32.totalorder %s21, 0
      %p174 = por %p172, %p173
      %s175 = ssub.s32 %s15, %s22
      %p176 = scmp.eq.s32.totalorder %s175, 0
      %s178 = sadd.s32 %s177, 1
      %s179 = scalar_select %p176, %s177, %s178
      %p182 = pneg %p176
      %p183 = scmp.eq.s32.totalorder %s15, 1
      %p184 = por %p182, %p183
      %p185 = scmp.ne.s32.totalorder %s177, %s180
      %p186 = scmp.eq.s32.totalorder %s15, 0
      %p187 = por %p185, %p186
      %p188 = scmp.ne.s32.totalorder %s177, %s180
      %p189 = scmp.eq.s32.totalorder %s20, 1
      %p190 = por %p188, %p189
      %p191 = scmp.ne.s32.totalorder %s180, %s181
      %p192 = scmp.eq.s32.totalorder %s20, 0
      %p193 = por %p191, %p192
      %p194 = scmp.ne.s32.totalorder %s180, %s181
      %p195 = scmp.eq.s32.totalorder %s21, 1
      %p196 = por %p194, %p195
      %p198 = scmp.ne.s32.totalorder %s181, %s197
      %p199 = scmp.eq.s32.totalorder %s21, 0
      %p200 = por %p198, %p199
      %p201 = scmp.le.s32.totalorder 1, %s15
      %p202 = scmp.lt.s32.totalorder %s15, 3
      %p203 = pnand %p201, %p202
      %p204 = pneg %p203
      // Predicated region
      $region9: #{fwd.1} parent=5 // pred_check
        _
      $region10: #{fwd.1} parent=5 // pred_check_branch
        %206 = sbr.rel (%p203) target = $region12
      $region11: #{fwd.1} parent=5 // pred_region
        %s207 = ssub.s32 %s15, 1
        // Predicated region
        $region13: #{fwd.1} parent=11 // pred_check
          %p208 = pneg %p62
        $region14: #{fwd.1} parent=11 // pred_check_branch
          %210 = sbr.rel (%p208) target = $region16
        $region15: #{fwd.1} parent=11 // pred_region
          _
        $region16: #{fwd.1} parent=11 // pred_fallthru
          _
        // Predicated region
        $region17: #{fwd.1} parent=11 // pred_check
          %p211 = pneg %p83
        $region18: #{fwd.1} parent=11 // pred_check_branch
          %213 = sbr.rel (%p211) target = $region20
        $region19: #{fwd.1} parent=11 // pred_region
          _
        $region20: #{fwd.1} parent=11 // pred_fallthru
          _
        // Predicated region
        $region21: #{fwd.1} parent=11 // pred_check
          %p214 = pneg %p104
        $region22: #{fwd.1} parent=11 // pred_check_branch
          %216 = sbr.rel (%p214) target = $region24
        $region23: #{fwd.1} parent=11 // pred_region
          %218 = vsyncadd [#allocation3], 0
          %s219 = sshll.u32 %s3, 4
          %s220 = int_to_ptr.hbm [resolvable:$true] %s219
          %s221 = sshll.u32 [#allocation2], 4
          %s222 = int_to_ptr.vmem [resolvable:$true] %s221
          %227 = dma.hbm_to_vmem [thread:$0]  %s220, 1024, %s222, [#allocation3], 64, 64, 4
        $region24: #{fwd.1} parent=11 // pred_fallthru
          _
        // Predicated region
        $region25: #{fwd.1} parent=11 // pred_check
          %p228 = pneg %p125
        $region26: #{fwd.1} parent=11 // pred_check_branch
          %230 = sbr.rel (%p228) target = $region28
        $region27: #{fwd.1} parent=11 // pred_region
          _
        $region28: #{fwd.1} parent=11 // pred_fallthru
          _
        // Predicated region
        $region29: #{fwd.1} parent=11 // pred_check
          %p231 = pneg %p146
        $region30: #{fwd.1} parent=11 // pred_check_branch
          %233 = sbr.rel (%p231) target = $region32
        $region31: #{fwd.1} parent=11 // pred_region
          %235 = vsyncadd [#allocation5], 0
          %s236 = sshll.u32 %s5, 4
          %s237 = int_to_ptr.hbm [resolvable:$true] %s236
          %s238 = sshll.u32 [#allocation4], 4
          %s239 = int_to_ptr.vmem [resolvable:$true] %s238
          %244 = dma.hbm_to_vmem [thread:$0]  %s237, 1024, %s239, [#allocation5], 64, 64, 4
        $region32: #{fwd.1} parent=11 // pred_fallthru
          _
        // Predicated region
        $region33: #{fwd.1} parent=11 // pred_check
          %p245 = pneg %p167
        $region34: #{fwd.1} parent=11 // pred_check_branch
          %247 = sbr.rel (%p245) target = $region36
        $region35: #{fwd.1} parent=11 // pred_region
          _
        $region36: #{fwd.1} parent=11 // pred_fallthru
          _
      $region12: #{fwd.1} parent=5 // pred_fallthru
        _
      %p248 = scmp.lt.s32.totalorder %s15, 2
      // Predicated region
      $region37: #{fwd.1} parent=5 // pred_check
        %p249 = pneg %p248
      $region38: #{fwd.1} parent=5 // pred_check_branch
        %251 = sbr.rel (%p249) target = $region40
      $region39: #{fwd.1} parent=5 // pred_region
        // Predicated region
        $region41: #{fwd.1} parent=39 // pred_check
          %p252 = pneg %p35
        $region42: #{fwd.1} parent=39 // pred_check_branch
          %254 = sbr.rel (%p252) target = $region44
        $region43: #{fwd.1} parent=39 // pred_region
          %s255 = smul.u32 4, %s15
          %p256 = scmp.lt.s32.totalorder %s255, 7
          %s257 = scalar_select %p256, %s255, 7
          %s258 = smul.addr %s257, 4
          %s259 = scalar_lea.vmem %s0, %s258
          %s260 = smul.u32 4, %s15
        $region44: #{fwd.1} parent=39 // pred_fallthru
          _
      $region40: #{fwd.1} parent=5 // pred_fallthru
        _
      %p261 = scmp.le.s32.totalorder 1, %s15
      %p262 = scmp.lt.s32.totalorder %s15, 3
      %p263 = pnand %p261, %p262
      %p264 = pneg %p263
      // Predicated region
      $region45: #{fwd.1} parent=5 // pred_check
        _
      $region46: #{fwd.1} parent=5 // pred_check_branch
        %266 = sbr.rel (%p263) target = $region48
      $region47: #{fwd.1} parent=5 // pred_region
        %s267 = ssub.s32 %s15, 1
        // Predicated region
        $region49: #{fwd.1} parent=47 // pred_check
          %p268 = pneg %p104
        $region50: #{fwd.1} parent=47 // pred_check_branch
          %270 = sbr.rel (%p268) target = $region52
        $region51: #{fwd.1} parent=47 // pred_region
          %272 = dma.done [#allocation3], 1024
        $region52: #{fwd.1} parent=47 // pred_fallthru
          _
        // Predicated region
        $region53: #{fwd.1} parent=47 // pred_check
          %p273 = pneg %p146
        $region54: #{fwd.1} parent=47 // pred_check_branch
          %275 = sbr.rel (%p273) target = $region56
        $region55: #{fwd.1} parent=47 // pred_region
          %277 = dma.done [#allocation5], 1024
        $region56: #{fwd.1} parent=47 // pred_fallthru
          _
        %s278 = smul.u32 4, %s20
        %p279 = scmp.lt.s32.totalorder %s278, 7
        %s280 = scalar_select %p279, %s278, 7
        %s281 = smul.addr %s280, 4
        %s282 = scalar_lea.vmem %s0, %s281
        %p283 = pneg %p41
        %p284 = pneg %p38
        %p285 = pneg %p62
        %p286 = pneg %p59
        %p287 = pneg %p83
        %p288 = pneg %p80
        %p289 = pneg %p104
        %p290 = pneg %p101
        %p291 = pneg %p125
        %p292 = pneg %p122
        %p293 = pneg %p146
        %p294 = pneg %p143
        %p295 = pneg %p167
        %p296 = pneg %p164
        %p297 = pneg %p193
        %p298 = pneg %p190
        %s299 = smul.u32 4, %s20
        %p300 = scmp.lt.s32.totalorder %s299, 7
        %s301 = scalar_select %p300, %s299, 7
        %s302 = smul.addr %s301, 4
        %s303 = scalar_lea.vmem %s7, %s302
        %s304 = smul.u32 4, %s20
        %p305 = scmp.lt.s32.totalorder %s304, 7
        %s306 = scalar_select %p305, %s304, 7
        %s307 = smul.addr %s306, 4
        %s308 = scalar_lea.vmem %s0, %s307
        %s309 = smul.u32 4, %s20
        %s310 = smul.u32 4, %s20
        %p311 = scmp.lt.s32.totalorder %s310, 7
        %s312 = scalar_select %p311, %s310, 7
        %s313 = smul.addr %s312, 4
        %s314 = scalar_lea.vmem %s7, %s313
        %s315 = smul.u32 4, %s20
        %v316 = vld [vmem:[%s308] sm:$0xf]
        %v317 = vld [vmem:[%s308 + $0x4] sm:$0xf]
        %v318 = vld [vmem:[%s308 + $0x8] sm:$0xf]
        %v319 = vld [vmem:[%s308 + $0xc] sm:$0xf]
        %v320 = vld [vmem:[%s1] sm:$0xf]
        %v321 = vld [vmem:[%s1 + $0x4] sm:$0xf]
        %v322 = vld [vmem:[%s1 + $0x8] sm:$0xf]
        %v323 = vld [vmem:[%s1 + $0xc] sm:$0xf]
        %v324 = vld [vmem:[%s1 + $0x10] sm:$0xf]
        %v325 = vld [vmem:[%s1 + $0x14] sm:$0xf]
        %v326 = vld [vmem:[%s1 + $0x18] sm:$0xf]
        %v327 = vld [vmem:[%s1 + $0x1c] sm:$0xf]
        %v328 = vld [vmem:[%s1 + $0x20] sm:$0xf]
        %v329 = vld [vmem:[%s1 + $0x24] sm:$0xf]
        %v330 = vld [vmem:[%s1 + $0x28] sm:$0xf]
        %v331 = vld [vmem:[%s1 + $0x2c] sm:$0xf]
        %v332 = vld [vmem:[%s1 + $0x30] sm:$0xf]
        %v333 = vld [vmem:[%s1 + $0x34] sm:$0xf]
        %v334 = vld [vmem:[%s1 + $0x38] sm:$0xf]
        %v335 = vld [vmem:[%s1 + $0x3c] sm:$0xf]
        %v336 = vld [vmem:[%s2] sm:$0x1]
        %v338 = vperm.slane %v336, 0
        %v344 = vunpack.c.l.b16 %v316
        %v345 = vunpack.c.l.b16 %v317
        %v346 = vunpack.c.l.b16 %v318
        %v347 = vunpack.c.l.b16 %v319
        %v348 = vpack.c.b16 %v345, %v344
        %v349 = vpack.c.b16 %v347, %v346
        %v368 = vunpack.c.l.b16 %v320
        %v369 = vunpack.c.l.b16 %v321
        %v370 = vunpack.c.l.b16 %v322
        %v371 = vunpack.c.l.b16 %v323
        %v372 = vunpack.c.l.b16 %v324
        %v373 = vunpack.c.l.b16 %v325
        %v374 = vunpack.c.l.b16 %v326
        %v375 = vunpack.c.l.b16 %v327
        %v376 = vunpack.c.l.b16 %v328
        %v377 = vunpack.c.l.b16 %v329
        %v378 = vunpack.c.l.b16 %v330
        %v379 = vunpack.c.l.b16 %v331
        %v380 = vunpack.c.l.b16 %v332
        %v381 = vunpack.c.l.b16 %v333
        %v382 = vunpack.c.l.b16 %v334
        %v383 = vunpack.c.l.b16 %v335
        %v384 = vpack.c.b16 %v369, %v368
        %v385 = vpack.c.b16 %v371, %v370
        %v386 = vpack.c.b16 %v373, %v372
        %v387 = vpack.c.b16 %v375, %v374
        %v388 = vpack.c.b16 %v377, %v376
        %v389 = vpack.c.b16 %v379, %v378
        %v390 = vpack.c.b16 %v381, %v380
        %v391 = vpack.c.b16 %v383, %v382
        %400 = vmatpush.bf16.msra.mxu0 %v391
        %401 = vmatpush.bf16.msra.mxu0 %v390
        %402 = vmatpush.bf16.msra.mxu0 %v389
        %403 = vmatpush.bf16.msra.mxu0 %v388
        %404 = vmatpush.bf16.msra.mxu0 %v387
        %405 = vmatpush.bf16.msra.mxu0 %v386
        %406 = vmatpush.bf16.msra.mxu0 %v385
        %407 = vmatpush.bf16.msra.mxu0 %v384
        %408 = vmatmul.bf16.gmra.mxu0 %v348
        %v409 = vpop.f32.mrf.mxu0
        %v410 = vadd.f32 %v338, %v409
        %v411 = vpop.f32.mrf.mxu0
        %v412 = vadd.f32 %v338, %v411
        %413 = vmatmul.bf16.gmra.mxu0 %v349
        %v414 = vpop.f32.mrf.mxu0
        %v415 = vadd.f32 %v338, %v414
        %v416 = vpop.f32.mrf.mxu0
        %v417 = vadd.f32 %v338, %v416
        %418 = vdwg.mxu0
        %v419 = vmax.f32 %v410, 0.0
        %v420 = vmax.f32 %v412, 0.0
        %v421 = vmax.f32 %v415, 0.0
        %v422 = vmax.f32 %v417, 0.0
        %v423 = vpack.c.bf16 %v420, %v419
        %v424 = vpack.c.bf16 %v422, %v421
        %v425 = vld [vmem:[#allocation2] sm:$0xf]
        %v426 = vld [vmem:[#allocation2 + $0x4] sm:$0xf]
        %v427 = vld [vmem:[#allocation2 + $0x8] sm:$0xf]
        %v428 = vld [vmem:[#allocation2 + $0xc] sm:$0xf]
        %v429 = vld [vmem:[#allocation2 + $0x10] sm:$0xf]
        %v430 = vld [vmem:[#allocation2 + $0x14] sm:$0xf]
        %v431 = vld [vmem:[#allocation2 + $0x18] sm:$0xf]
        %v432 = vld [vmem:[#allocation2 + $0x1c] sm:$0xf]
        %v433 = vld [vmem:[#allocation2 + $0x20] sm:$0xf]
        %v434 = vld [vmem:[#allocation2 + $0x24] sm:$0xf]
        %v435 = vld [vmem:[#allocation2 + $0x28] sm:$0xf]
        %v436 = vld [vmem:[#allocation2 + $0x2c] sm:$0xf]
        %v437 = vld [vmem:[#allocation2 + $0x30] sm:$0xf]
        %v438 = vld [vmem:[#allocation2 + $0x34] sm:$0xf]
        %v439 = vld [vmem:[#allocation2 + $0x38] sm:$0xf]
        %v440 = vld [vmem:[#allocation2 + $0x3c] sm:$0xf]
        %v441 = vld [vmem:[%s4] sm:$0x1]
        %v443 = vperm.slane %v441, 0
        %v461 = vunpack.c.l.b16 %v425
        %v462 = vunpack.c.l.b16 %v426
        %v463 = vunpack.c.l.b16 %v427
        %v464 = vunpack.c.l.b16 %v428
        %v465 = vunpack.c.l.b16 %v429
        %v466 = vunpack.c.l.b16 %v430
        %v467 = vunpack.c.l.b16 %v431
        %v468 = vunpack.c.l.b16 %v432
        %v469 = vunpack.c.l.b16 %v433
        %v470 = vunpack.c.l.b16 %v434
        %v471 = vunpack.c.l.b16 %v435
        %v472 = vunpack.c.l.b16 %v436
        %v473 = vunpack.c.l.b16 %v437
        %v474 = vunpack.c.l.b16 %v438
        %v475 = vunpack.c.l.b16 %v439
        %v476 = vunpack.c.l.b16 %v440
        %v477 = vpack.c.b16 %v462, %v461
        %v478 = vpack.c.b16 %v464, %v463
        %v479 = vpack.c.b16 %v466, %v465
        %v480 = vpack.c.b16 %v468, %v467
        %v481 = vpack.c.b16 %v470, %v469
        %v482 = vpack.c.b16 %v472, %v471
        %v483 = vpack.c.b16 %v474, %v473
        %v484 = vpack.c.b16 %v476, %v475
        %493 = vmatpush.bf16.msra.mxu0 %v484
        %494 = vmatpush.bf16.msra.mxu0 %v483
        %495 = vmatpush.bf16.msra.mxu0 %v482
        %496 = vmatpush.bf16.msra.mxu0 %v481
        %497 = vmatpush.bf16.msra.mxu0 %v480
        %498 = vmatpush.bf16.msra.mxu0 %v479
        %499 = vmatpush.bf16.msra.mxu0 %v478
        %500 = vmatpush.bf16.msra.mxu0 %v477
        %501 = vmatmul.bf16.gmra.mxu0 %v423
        %v502 = vpop.f32.mrf.mxu0
        %v503 = vadd.f32 %v443, %v502
        %v504 = vpop.f32.mrf.mxu0
        %v505 = vadd.f32 %v443, %v504
        %506 = vmatmul.bf16.gmra.mxu0 %v424
        %v507 = vpop.f32.mrf.mxu0
        %v508 = vadd.f32 %v443, %v507
        %v509 = vpop.f32.mrf.mxu0
        %v510 = vadd.f32 %v443, %v509
        %511 = vdwg.mxu0
        %v512 = vmax.f32 %v503, 0.0
        %v513 = vmax.f32 %v505, 0.0
        %v514 = vmax.f32 %v508, 0.0
        %v515 = vmax.f32 %v510, 0.0
        %v516 = vpack.c.bf16 %v513, %v512
        %v517 = vpack.c.bf16 %v515, %v514
        %v518 = vld [vmem:[#allocation4] sm:$0xf]
        %v519 = vld [vmem:[#allocation4 + $0x4] sm:$0xf]
        %v520 = vld [vmem:[#allocation4 + $0x8] sm:$0xf]
        %v521 = vld [vmem:[#allocation4 + $0xc] sm:$0xf]
        %v522 = vld [vmem:[#allocation4 + $0x10] sm:$0xf]
        %v523 = vld [vmem:[#allocation4 + $0x14] sm:$0xf]
        %v524 = vld [vmem:[#allocation4 + $0x18] sm:$0xf]
        %v525 = vld [vmem:[#allocation4 + $0x1c] sm:$0xf]
        %v526 = vld [vmem:[#allocation4 + $0x20] sm:$0xf]
        %v527 = vld [vmem:[#allocation4 + $0x24] sm:$0xf]
        %v528 = vld [vmem:[#allocation4 + $0x28] sm:$0xf]
        %v529 = vld [vmem:[#allocation4 + $0x2c] sm:$0xf]
        %v530 = vld [vmem:[#allocation4 + $0x30] sm:$0xf]
        %v531 = vld [vmem:[#allocation4 + $0x34] sm:$0xf]
        %v532 = vld [vmem:[#allocation4 + $0x38] sm:$0xf]
        %v533 = vld [vmem:[#allocation4 + $0x3c] sm:$0xf]
        %v534 = vld [vmem:[%s6] sm:$0x1]
        %v536 = vperm.slane %v534, 0
        %v554 = vunpack.c.l.b16 %v518
        %v555 = vunpack.c.l.b16 %v519
        %v556 = vunpack.c.l.b16 %v520
        %v557 = vunpack.c.l.b16 %v521
        %v558 = vunpack.c.l.b16 %v522
        %v559 = vunpack.c.l.b16 %v523
        %v560 = vunpack.c.l.b16 %v524
        %v561 = vunpack.c.l.b16 %v525
        %v562 = vunpack.c.l.b16 %v526
        %v563 = vunpack.c.l.b16 %v527
        %v564 = vunpack.c.l.b16 %v528
        %v565 = vunpack.c.l.b16 %v529
        %v566 = vunpack.c.l.b16 %v530
        %v567 = vunpack.c.l.b16 %v531
        %v568 = vunpack.c.l.b16 %v532
        %v569 = vunpack.c.l.b16 %v533
        %v570 = vpack.c.b16 %v555, %v554
        %v571 = vpack.c.b16 %v557, %v556
        %v572 = vpack.c.b16 %v559, %v558
        %v573 = vpack.c.b16 %v561, %v560
        %v574 = vpack.c.b16 %v563, %v562
        %v575 = vpack.c.b16 %v565, %v564
        %v576 = vpack.c.b16 %v567, %v566
        %v577 = vpack.c.b16 %v569, %v568
        %586 = vmatpush.bf16.msra.mxu0 %v577
        %587 = vmatpush.bf16.msra.mxu0 %v576
        %588 = vmatpush.bf16.msra.mxu0 %v575
        %589 = vmatpush.bf16.msra.mxu0 %v574
        %590 = vmatpush.bf16.msra.mxu0 %v573
        %591 = vmatpush.bf16.msra.mxu0 %v572
        %592 = vmatpush.bf16.msra.mxu0 %v571
        %593 = vmatpush.bf16.msra.mxu0 %v570
        %594 = vmatmul.bf16.gmra.mxu0 %v516
        %v595 = vpop.f32.mrf.mxu0
        %v596 = vadd.f32 %v536, %v595
        %v597 = vpop.f32.mrf.mxu0
        %v598 = vadd.f32 %v536, %v597
        %599 = vmatmul.bf16.gmra.mxu0 %v517
        %v600 = vpop.f32.mrf.mxu0
        %v601 = vadd.f32 %v536, %v600
        %v602 = vpop.f32.mrf.mxu0
        %v603 = vadd.f32 %v536, %v602
        %604 = vdwg.mxu0
        %v605 = vpack.c.bf16 %v596, %v596
        %v606 = vpack.c.bf16 %v598, %v598
        %v607 = vpack.c.bf16 %v601, %v601
        %v608 = vpack.c.bf16 %v603, %v603
        %609 = vst [vmem:[%s314] sm:$0xf] %v605
        %610 = vst [vmem:[%s314 + $0x4] sm:$0xf] %v606
        %611 = vst [vmem:[%s314 + $0x8] sm:$0xf] %v607
        %612 = vst [vmem:[%s314 + $0xc] sm:$0xf] %v608
        %s613 = smul.u32 4, %s20
        %p614 = scmp.lt.s32.totalorder %s613, 7
        %s615 = scalar_select %p614, %s613, 7
        %s616 = smul.addr %s615, 4
        %s617 = scalar_lea.vmem %s7, %s616
        // Predicated region
        $region57: #{fwd.1} parent=47 // pred_check
          %p618 = pneg %p190
        $region58: #{fwd.1} parent=47 // pred_check_branch
          %620 = sbr.rel (%p618) target = $region60
        $region59: #{fwd.1} parent=47 // pred_region
          %s621 = smul.u32 4, %s20
        $region60: #{fwd.1} parent=47 // pred_fallthru
          _
      $region48: #{fwd.1} parent=5 // pred_fallthru
        _
      %p622 = scmp.le.s32.totalorder 2, %s15
      // Predicated region
      $region61: #{fwd.1} parent=5 // pred_check
        %p623 = pneg %p622
      $region62: #{fwd.1} parent=5 // pred_check_branch
        %625 = sbr.rel (%p623) target = $region64
      $region63: #{fwd.1} parent=5 // pred_region
        %s626 = ssub.s32 %s15, 2
        // Predicated region
        $region65: #{fwd.1} parent=63 // pred_check
          %p627 = pneg %p196
        $region66: #{fwd.1} parent=63 // pred_check_branch
          %629 = sbr.rel (%p627) target = $region68
        $region67: #{fwd.1} parent=63 // pred_region
          %s630 = smul.u32 4, %s21
          %p631 = scmp.lt.s32.totalorder %s630, 7
          %s632 = scalar_select %p631, %s630, 7
          %s633 = smul.addr %s632, 4
          %s634 = scalar_lea.vmem %s7, %s633
        $region68: #{fwd.1} parent=63 // pred_fallthru
          _
      $region64: #{fwd.1} parent=5 // pred_fallthru
        _
    $region6: #{fwd.1} parent=1 // loop_footer
      %s19 = sadd.s32 1, %s15
    $region7: #{fwd.1} parent=1 // loop_footer_branch
      %14 = sbr.rel target = $region3
    $region8: #{fwd.1} parent=1 // loop_exit
      _
    %635 = vsyncpa [#allocation3], 1
    %s636 = scalar_lea.sflag [#allocation3], 1
    %637 = vsyncpa %s636, 1
    %638 = vsyncpa [#allocation5], 1

</llo_original>
